<compile_context>
chip_gen: v5e
topology: v5e:2x2
jax: 0.10.0
libtpu: 0.0.40
codegen_flags: <defaults>
</compile_context>

<pallas_src>
import functools

import jax
import jax.numpy as jnp
from jax.experimental import pallas as pl
from jax.experimental.pallas import tpu as pltpu


def _neg_binomial_kernel(h_ref, w_ref, b_ref, out_ref, *, out_size):
    """One fused projection: out[:, :O] = mu, out[:, O:] = alpha."""
    h = h_ref[...]

    # Single fused (bm, H) @ (H, 2*O) matmul on the MXU, f32 accumulate.
    lin = jnp.dot(h, w_ref[...], preferred_element_type=jnp.float32)
    lin = lin + b_ref[...]

    # Numerically stable softplus: max(x,0) + log1p(exp(-|x|)).
    sp = jnp.maximum(lin, 0.0) + jnp.log1p(jnp.exp(-jnp.abs(lin)))

    # +1e-6 on the alpha half only (compile-time constant row, lane-broadcast).
    eps = jnp.concatenate(
        [jnp.zeros((1, out_size), jnp.float32),
         jnp.full((1, out_size), 1e-6, jnp.float32)],
        axis=-1,
    )
    out_ref[...] = (sp + eps).astype(out_ref.dtype)


def negative_binomial_forward(h, w_mu, b_mu, w_sig, b_sig, *, block_m=256):
    """h: (B, H) f32; w_*: (H, O) f32 (already transposed); b_*: (O,) f32.

    Returns (mu_t, alpha_t), each (B, O) f32.
    """
    B, H = h.shape
    O = w_mu.shape[1]

    # Host-side fusion of the two linear layers into one projection.
    w = jnp.concatenate([w_mu, w_sig], axis=1)            # (H, 2*O)
    b = jnp.concatenate([b_mu, b_sig]).reshape(1, 2 * O)  # (1, 2*O)

    # Row tile: big enough to fill the MXU for real DeepAR batches,
    # shrinks to B for the small demo shape.
    bm = min(block_m, B)
    grid = (pl.cdiv(B, bm),)

    out = pl.pallas_call(
        functools.partial(_neg_binomial_kernel, out_size=O),
        out_shape=jax.ShapeDtypeStruct((B, 2 * O), jnp.float32),
        grid=grid,
        in_specs=[
            pl.BlockSpec((bm, H), lambda i: (i, 0)),        # activations, tiled
            pl.BlockSpec((H, 2 * O), lambda i: (0, 0)),     # fused weight, resident
            pl.BlockSpec((1, 2 * O), lambda i: (0, 0)),     # fused bias, resident
        ],
        out_specs=pl.BlockSpec((bm, 2 * O), lambda i: (i, 0)),  # lane-packed slab
        compiler_params=pltpu.CompilerParams(
            dimension_semantics=("parallel",)),
    )(h, w, b)

    # Free slices in the wrapper (the +1e-6 already applied in-kernel).
    mu_t = out[:, :O]
    alpha_t = out[:, O:]
    return mu_t, alpha_t


def _init_linear_params(key, in_features, out_features):
    """Deterministic init mirroring nn.Linear default (uniform +/- 1/sqrt(in))."""
    k_w, k_b = jax.random.split(key)
    bound = 1.0 / jnp.sqrt(float(in_features))
    # PyTorch stores weight as (out, in); we keep (in, out) for the kernel.
    w = jax.random.uniform(k_w, (in_features, out_features), jnp.float32,
                           minval=-bound, maxval=bound)
    b = jax.random.uniform(k_b, (out_features,), jnp.float32,
                           minval=-bound, maxval=bound)
    return w, b


if __name__ == "__main__":
    key = jax.random.PRNGKey(0)
    k_h, k_mu, k_sig = jax.random.split(key, 3)

    batch = 8
    input_size = 32   # hidden h_{i,t} column size
    output_size = 16  # embedding size

    h = jax.random.normal(k_h, (batch, input_size), jnp.float32)
    w_mu, b_mu = _init_linear_params(k_mu, input_size, output_size)
    w_sig, b_sig = _init_linear_params(k_sig, input_size, output_size)

    mu_t, alpha_t = negative_binomial_forward(h, w_mu, b_mu, w_sig, b_sig)
    jax.block_until_ready((mu_t, alpha_t))

    # Pure-JAX reference check (values small enough that naive form is exact).
    mu_ref = jnp.log(1.0 + jnp.exp(h @ w_mu + b_mu))
    alpha_ref = jnp.log(1.0 + jnp.exp(h @ w_sig + b_sig)) + 1e-6
    assert mu_t.shape == (batch, output_size)
    assert alpha_t.shape == (batch, output_size)
    assert jnp.allclose(mu_t, mu_ref, atol=1e-5, rtol=1e-5)
    assert jnp.allclose(alpha_t, alpha_ref, atol=1e-5, rtol=1e-5)

    print("KERNEL_OK")
</pallas_src>

<mosaic_0001>
module attributes {stable_mosaic.version = 11 : i64} {
  func.func @_neg_binomial_kernel(%arg0: i32, %arg1: memref<8x32xf32, #tpu.memory_space<vmem>>, %arg2: memref<32x32xf32, #tpu.memory_space<vmem>>, %arg3: memref<1x32xf32, #tpu.memory_space<vmem>>, %arg4: memref<8x32xf32, #tpu.memory_space<vmem>>) attributes {dimension_semantics = [#tpu.dimension_semantics<parallel>], iteration_bounds = array<i64: 1>, scalar_prefetch = 0 : i64, scratch_operands = 0 : i64, tpu.core_type = #tpu.core_type<tc>, window_params = [{transform_indices = @transform_0, window_bounds = array<i64: 8, 32>}, {pipeline_mode = #tpu.pipeline_mode<synchronous>, transform_indices = @transform_1, window_bounds = array<i64: 32, 32>}, {pipeline_mode = #tpu.pipeline_mode<synchronous>, transform_indices = @transform_2, window_bounds = array<i64: 1, 32>}, {transform_indices = @transform_3, window_bounds = array<i64: 8, 32>}]} {
    %c0 = arith.constant 0 : index
    %c0_0 = arith.constant 0 : index
    %0 = vector.load %arg1[%c0, %c0_0] : memref<8x32xf32, #tpu.memory_space<vmem>>, vector<8x32xf32>
    %c0_1 = arith.constant 0 : index
    %c0_2 = arith.constant 0 : index
    %1 = vector.load %arg2[%c0_1, %c0_2] : memref<32x32xf32, #tpu.memory_space<vmem>>, vector<32x32xf32>
    %cst = arith.constant dense<0.000000e+00> : vector<8x32xf32>
    %2 = tpu.matmul %0, %1, %cst {dimension_numbers = #tpu.dot_dimension_numbers<[1], [0], [0], [1], [0, 0, 1, 1], [], []>} : vector<8x32xf32>, vector<32x32xf32>, vector<8x32xf32> -> vector<8x32xf32>
    %c0_3 = arith.constant 0 : index
    %c0_4 = arith.constant 0 : index
    %3 = vector.load %arg3[%c0_3, %c0_4] : memref<1x32xf32, #tpu.memory_space<vmem>>, vector<1x32xf32>
    %4 = vector.broadcast %3 : vector<1x32xf32> to vector<8x32xf32>
    %5 = arith.addf %2, %4 : vector<8x32xf32>
    %cst_5 = arith.constant 0.000000e+00 : f32
    %6 = vector.broadcast %cst_5 : f32 to vector<8x32xf32>
    %7 = arith.maximumf %5, %6 : vector<8x32xf32>
    %8 = math.absf %5 : vector<8x32xf32>
    %cst_6 = arith.constant 0.000000e+00 : f32
    %9 = vector.broadcast %cst_6 : f32 to vector<8x32xf32>
    %10 = arith.subf %9, %8 : vector<8x32xf32>
    %11 = math.exp %10 : vector<8x32xf32>
    %12 = math.log1p %11 : vector<8x32xf32>
    %13 = arith.addf %7, %12 : vector<8x32xf32>
    %cst_7 = arith.constant 0.000000e+00 : f32
    %14 = vector.broadcast %cst_7 : f32 to vector<1x16xf32>
    %cst_8 = arith.constant 9.99999997E-7 : f32
    %15 = vector.broadcast %cst_8 : f32 to vector<1x16xf32>
    %16 = tpu.concatenate %14, %15 in 1 : vector<1x16xf32>, vector<1x16xf32> -> vector<1x32xf32>
    %17 = vector.broadcast %16 : vector<1x32xf32> to vector<8x32xf32>
    %18 = arith.addf %13, %17 : vector<8x32xf32>
    %c0_9 = arith.constant 0 : index
    %c0_10 = arith.constant 0 : index
    %19 = vector.load %arg4[%c0_9, %c0_10] : memref<8x32xf32, #tpu.memory_space<vmem>>, vector<8x32xf32>
    tpu.vector_store %arg4[%c0_9, %c0_10], %18 {strides = array<i32>} : memref<8x32xf32, #tpu.memory_space<vmem>>, vector<8x32xf32>,
    return
  }
  func.func @transform_0(%arg0: i32) -> (i32, i32) {
    %c0_i32 = arith.constant 0 : i32
    %c0_i32_0 = arith.constant 0 : i32
    return %arg0, %c0_i32 : i32, i32
  }
  func.func @transform_1(%arg0: i32) -> (i32, i32) {
    %c0_i32 = arith.constant 0 : i32
    %c0_i32_0 = arith.constant 0 : i32
    %c0_i32_1 = arith.constant 0 : i32
    return %c0_i32, %c0_i32_0 : i32, i32
  }
  func.func @transform_2(%arg0: i32) -> (i32, i32) {
    %c0_i32 = arith.constant 0 : i32
    %c0_i32_0 = arith.constant 0 : i32
    %c0_i32_1 = arith.constant 0 : i32
    return %c0_i32, %c0_i32_0 : i32, i32
  }
  func.func @transform_3(%arg0: i32) -> (i32, i32) {
    %c0_i32 = arith.constant 0 : i32
    %c0_i32_0 = arith.constant 0 : i32
    return %arg0, %c0_i32 : i32, i32
  }
}

</mosaic_0001>

<llo_original>
// kernel: tpu_custom_call.1
$region0: #{tpu_custom_call.1}
  #allocation0 [shape = 'u32[]', space=smem, size = 0x4, offset = 0x4, fixed_abs, tag = 'smem constant byte address 0x4 - core index']
  #allocation1 [shape = 'u32[72,128]{1,0:T(1,128)}', space=vmem, size = 0x9000, scoped, tag = 'internal scratch']
  %s0 = inlined_call_operand.hbm [shape: f32[8,32], index: 0, kind: input, shape index: {}]
  %s1 = inlined_call_operand.hbm [shape: f32[32,32], index: 1, kind: input, shape index: {}]
  %s2 = inlined_call_operand.vmem [shape: f32[1,32], index: 2, kind: input, shape index: {}]
  %s3 = inlined_call_operand.hbm [shape: f32[8,32], index: 3, kind: output, shape index: {}]
  %s4 = sld [smem:[#allocation0]]
  $region30: #{tpu_custom_call.1} parent=0
    _
  %s6 = ssub.s32 1, %s4
  %s7 = scalar_select 0, %s6, %s4
  $region1: #{tpu_custom_call.1} parent=0
    #allocation2 [shape = 'u8[4096]{0}', space=vmem, size = 0x1000, scoped, tag = 'input window, operand 0, single buffered']
    #allocation3 [shape = 's32[1]{0}', space=sflag, size = 0x4, scoped, tag = 'scoped memory for tpu_custom_call.1']
    #allocation4 [shape = 's32[1]{0}', space=sflag, size = 0x4, scoped, tag = 'scoped memory for tpu_custom_call.1']
    #allocation5 [shape = 'u8[16384]{0}', space=vmem, size = 0x4000, scoped, tag = 'input window, operand 1, single buffered']
    #allocation6 [shape = 's32[1]{0}', space=sflag, size = 0x4, scoped, tag = 'scoped memory for tpu_custom_call.1']
    #allocation7 [shape = 'u8[4096]{0}', space=vmem, size = 0x1000, scoped, tag = 'output window, operand 0, single buffered']
    %8 = vsyncpa [#allocation3], 0
    %9 = vsyncpa [#allocation6], 0
    %10 = vsyncpa [#allocation4], 0
    // Predicated region
    $region2: #{tpu_custom_call.1} parent=1 // pred_check
      _
    $region3: #{tpu_custom_call.1} parent=1 // pred_check_branch
      %12 = sbr.rel (0) target = $region5
    $region4: #{tpu_custom_call.1} parent=1 // pred_region
      %14 = vsyncadd [#allocation3], 0
      %s16 = sshll.u32 %s0, 4
      %s17 = int_to_ptr.hbm [resolvable:$true] %s16
      %s18 = sshll.u32 [#allocation2], 4
      %s19 = int_to_ptr.vmem [resolvable:$true] %s18
      %21 = dma.hbm_to_vmem [thread:$0]  %s17, 128, %s19, [#allocation3]
    $region5: #{tpu_custom_call.1} parent=1 // pred_fallthru
      _
    // Predicated region
    $region6: #{tpu_custom_call.1} parent=1 // pred_check
      _
    $region7: #{tpu_custom_call.1} parent=1 // pred_check_branch
      %23 = sbr.rel (0) target = $region9
    $region8: #{tpu_custom_call.1} parent=1 // pred_region
      %25 = vsyncadd [#allocation6], 0
      %s26 = sshll.u32 %s1, 4
      %s27 = int_to_ptr.hbm [resolvable:$true] %s26
      %s28 = sshll.u32 [#allocation5], 4
      %s29 = int_to_ptr.vmem [resolvable:$true] %s28
      %34 = dma.hbm_to_vmem [thread:$0]  %s27, 512, %s29, [#allocation6], 128, 128, 8
    $region9: #{tpu_custom_call.1} parent=1 // pred_fallthru
      _
    // Predicated region
    $region10: #{tpu_custom_call.1} parent=1 // pred_check
      _
    $region11: #{tpu_custom_call.1} parent=1 // pred_check_branch
      %36 = sbr.rel (0) target = $region13
    $region12: #{tpu_custom_call.1} parent=1 // pred_region
      _
    $region13: #{tpu_custom_call.1} parent=1 // pred_fallthru
      _
    // Predicated region
    $region14: #{tpu_custom_call.1} parent=1 // pred_check
      _
    $region15: #{tpu_custom_call.1} parent=1 // pred_check_branch
      %38 = sbr.rel (0) target = $region17
    $region16: #{tpu_custom_call.1} parent=1 // pred_region
      %40 = dma.done [#allocation3], 128
    $region17: #{tpu_custom_call.1} parent=1 // pred_fallthru
      _
    // Predicated region
    $region18: #{tpu_custom_call.1} parent=1 // pred_check
      _
    $region19: #{tpu_custom_call.1} parent=1 // pred_check_branch
      %42 = sbr.rel (0) target = $region21
    $region20: #{tpu_custom_call.1} parent=1 // pred_region
      %44 = dma.done [#allocation6], 512
    $region21: #{tpu_custom_call.1} parent=1 // pred_fallthru
      _
    %v45 = vld [vmem:[#allocation2] sm:$0xff]
    %v46 = vld [vmem:[#allocation5] sm:$0xff]
    %v47 = vld [vmem:[#allocation5 + $0x8] sm:$0xff]
    %v48 = vld [vmem:[#allocation5 + $0x10] sm:$0xff]
    %v49 = vld [vmem:[#allocation5 + $0x18] sm:$0xff]
    %v50 = vld [vmem:[%s2] sm:$0x1]
    %v52 = vperm.slane %v50, 0
    %vm54 = vcmask 261120
    %v56 = vsel %vm54, %v45, 0
    %58 = vmatpush.msra.mxu0 0.0
    %59 = vmatpush.msra.mxu0 0.0
    %60 = vmatpush.msra.mxu0 0.0
    %61 = vmatpush.msra.mxu0 0.0
    %62 = vmatpush.msra.mxu0 0.0
    %63 = vmatpush.msra.mxu0 0.0
    %64 = vmatpush.msra.mxu0 0.0
    %65 = vmatpush.msra.mxu0 0.0
    %66 = vmatpush.msra.mxu0 0.0
    %67 = vmatpush.msra.mxu0 0.0
    %68 = vmatpush.msra.mxu0 0.0
    %69 = vmatpush.msra.mxu0 0.0
    %70 = vmatpush.msra.mxu0 %v49
    %71 = vmatpush.msra.mxu0 %v48
    %72 = vmatpush.msra.mxu0 %v47
    %73 = vmatpush.msra.mxu0 %v46
    %74 = vmatmul.f32.gmra.mxu0 %v56
    %v75 = vpop.f32.mrf.mxu0
    %v76 = vadd.f32 %v52, %v75
    %77 = vdwg.mxu0
    %v78 = vmax.f32 %v76, 0.0
    %v79 = vand.u32 2147483647, %v76
    %v80 = vsub.f32 0.0, %v79
    %v81 = vmul.f32 %v80, 1.442695
    %v82 = vpow.pop %v81
    %v83 = vadd.f32 %v82, 1.0
    %v84 = vlog2.pop %v83
    %v85 = vmul.f32 %v84, 0.6931472
    %v86 = vmul.f32 -0.5, %v82
    %v87 = vadd.f32 %v86, 1.0
    %v88 = vmul.f32 %v87, %v82
    %v89 = vand.u32 2147483647, %v82
    %vm90 = vcmp.lt.f32.partialorder %v89, 0.0004427343
    %v91 = vsel %vm90, %v88, %v85
    %v92 = vadd.f32 %v78, %v91
    %vm93 = vcmask 130048
    %v94 = vsel %vm93, 0.0, 1e-06
    %v95 = vperm.slane %v94, 0
    %v96 = vadd.f32 %v92, %v95
    %97 = vst.msk [vmem:[#allocation7] sm:$0xff] %vm54, %v96
    // Predicated region
    $region22: #{tpu_custom_call.1} parent=1 // pred_check
      _
    $region23: #{tpu_custom_call.1} parent=1 // pred_check_branch
      %99 = sbr.rel (0) target = $region25
    $region24: #{tpu_custom_call.1} parent=1 // pred_region
      %101 = vsyncadd [#allocation4], 0
      %s103 = sshll.u32 [#allocation7], 4
      %s104 = int_to_ptr.vmem [resolvable:$true] %s103
      %s105 = sshll.u32 %s3, 4
      %s106 = int_to_ptr.hbm [resolvable:$true] %s105
      %108 = dma.vmem_to_hbm [thread:$0]  %s104, 128, %s106, [#allocation4]
    $region25: #{tpu_custom_call.1} parent=1 // pred_fallthru
      _
    // Predicated region
    $region26: #{tpu_custom_call.1} parent=1 // pred_check
      _
    $region27: #{tpu_custom_call.1} parent=1 // pred_check_branch
      %110 = sbr.rel (0) target = $region29
    $region28: #{tpu_custom_call.1} parent=1 // pred_region
      %112 = dma.done [#allocation4], 128
    $region29: #{tpu_custom_call.1} parent=1 // pred_fallthru
      _
    %113 = vsyncpa [#allocation3], 1
    %114 = vsyncpa [#allocation6], 1
    %115 = vsyncpa [#allocation4], 1

</llo_original>
